<compile_context>
chip_gen: v6e
topology: v6e:2x2x1
jax: 0.10.0
libtpu: 0.0.40
codegen_flags: <defaults>
</compile_context>

<pallas_src>
import numpy as np
import jax
import jax.numpy as jnp
from jax.experimental import pallas as pl
from jax.experimental.pallas import tpu as pltpu

_TILE_BUDGET_BYTES = 2 * 1024 * 1024  # per-tile cap; x2 buffers x (in+out) = 8 MiB VMEM


def _copy_kernel(x_ref, o_ref):
    # Identity copy of the current (row_tile, cols) VMEM block.
    o_ref[...] = x_ref[...]


def _largest_lane_cols(total: int, max_cols: int = 2048) -> int:
    """Largest multiple of 128 that divides `total` and is <= max_cols (0 if none)."""
    best = 0
    c = 128
    while c <= max_cols:
        if total % c == 0:
            best = c
        c += 128
    return best


def flatten(x: jax.Array) -> jax.Array:
    """Pallas equivalent of Flatten.forward: (B, *) -> (B, prod(*))."""
    b = x.shape[0]
    n = int(np.prod(x.shape[1:])) if x.ndim > 1 else 1
    total = b * n
    dtype_bytes = int(jnp.dtype(x.dtype).itemsize)

    # Row-major collapse of trailing dims (same ordering as torch .view) --
    # metadata-only in XLA.
    x2d = jnp.reshape(x, (b, n))

    cols = _largest_lane_cols(total)
    if cols == 0:
        # Irregular small shapes: single full block (block == full dims, so the
        # (8, 128) divisibility constraint does not apply).
        slab = x2d
        rows, cols = b, n
        row_tile = rows
    else:
        # Lane/sublane-dense slab: keeps stores as full unmasked vst even when
        # B is tiny (e.g. B=2 would otherwise use 2/8 sublanes per vreg).
        rows = total // cols
        slab = jnp.reshape(x2d, (rows, cols))
        if rows < 8:
            row_tile = rows  # block rows == full rows -> always legal
        else:
            budget_rows = max(8, (_TILE_BUDGET_BYTES // (cols * dtype_bytes)) // 8 * 8)
            row_tile = min(budget_rows, max(8, (rows // 8) * 8))

    grid = (pl.cdiv(rows, row_tile),)

    out_slab = pl.pallas_call(
        _copy_kernel,
        out_shape=jax.ShapeDtypeStruct(slab.shape, slab.dtype),
        grid=grid,
        in_specs=[pl.BlockSpec((row_tile, cols), lambda i: (i, 0))],
        out_specs=pl.BlockSpec((row_tile, cols), lambda i: (i, 0)),
        # Output aliases the input buffer: no extra HBM allocation, and under
        # jit (donatable intermediate) no duplicated array lives in HBM.
        input_output_aliases={0: 0},
        # Pure-bandwidth hint for XLA's scheduler.
        cost_estimate=pl.CostEstimate(
            flops=0,
            transcendentals=0,
            bytes_accessed=2 * total * dtype_bytes,
        ),
        compiler_params=pltpu.CompilerParams(
            dimension_semantics=("parallel",),      # lets v7x split across its 2 TCs
            vmem_limit_bytes=32 * 1024 * 1024,      # explicit budget, safe on v7x's 64 MiB
        ),
    )(slab)

    # Metadata-only view back to the flattened (B, N) shape.
    return jnp.reshape(out_slab, (b, n))


if __name__ == "__main__":
    key = jax.random.PRNGKey(0)

    # Primary test: small NCHW input matching the module's forward.
    B, C, H, W = 2, 4, 16, 16
    x = jax.random.normal(key, (B, C, H, W), dtype=jnp.float32)

    y = flatten(x)
    y = jax.block_until_ready(y)

    y_ref = jnp.reshape(x, (B, C * H * W))
    assert y.shape == (B, C * H * W), y.shape
    assert y.dtype == x.dtype
    np.testing.assert_array_equal(np.asarray(y), np.asarray(y_ref))

    # Secondary check: exercises the multi-tile pipelined path (rows >= 8,
    # grid > 1) while staying modest in size (~4 MiB).
    x2 = jax.random.normal(key, (64, 16, 32, 32), dtype=jnp.float32)
    y2 = jax.block_until_ready(flatten(x2))
    y2_ref = jnp.reshape(x2, (64, 16 * 32 * 32))
    assert y2.shape == y2_ref.shape
    np.testing.assert_array_equal(np.asarray(y2), np.asarray(y2_ref))

    print("KERNEL_OK")
</pallas_src>

<mosaic_0001>
module attributes {stable_mosaic.version = 11 : i64} {
  func.func @_copy_kernel(%arg0: i32, %arg1: memref<1x2048xf32, #tpu.memory_space<vmem>>, %arg2: memref<1x2048xf32, #tpu.memory_space<vmem>>) attributes {dimension_semantics = [#tpu.dimension_semantics<parallel>], iteration_bounds = array<i64: 1>, scalar_prefetch = 0 : i64, scratch_operands = 0 : i64, tpu.core_type = #tpu.core_type<tc>, window_params = [{transform_indices = @transform_0, window_bounds = array<i64: 1, 2048>}, {transform_indices = @transform_1, window_bounds = array<i64: 1, 2048>}]} {
    %c0 = arith.constant 0 : index
    %c0_0 = arith.constant 0 : index
    %0 = vector.load %arg1[%c0, %c0_0] : memref<1x2048xf32, #tpu.memory_space<vmem>>, vector<1x2048xf32>
    %c0_1 = arith.constant 0 : index
    %c0_2 = arith.constant 0 : index
    %1 = vector.load %arg2[%c0_1, %c0_2] : memref<1x2048xf32, #tpu.memory_space<vmem>>, vector<1x2048xf32>
    tpu.vector_store %arg2[%c0_1, %c0_2], %0 {strides = array<i32>} : memref<1x2048xf32, #tpu.memory_space<vmem>>, vector<1x2048xf32>,
    return
  }
  func.func @transform_0(%arg0: i32) -> (i32, i32) {
    %c0_i32 = arith.constant 0 : i32
    %c0_i32_0 = arith.constant 0 : i32
    return %arg0, %c0_i32 : i32, i32
  }
  func.func @transform_1(%arg0: i32) -> (i32, i32) {
    %c0_i32 = arith.constant 0 : i32
    %c0_i32_0 = arith.constant 0 : i32
    return %arg0, %c0_i32 : i32, i32
  }
}

</mosaic_0001>

<llo_original>
// kernel: tpu_custom_call.1
$region0: #{tpu_custom_call.1}
  #allocation0 [shape = 'u32[]', space=smem, size = 0x4, offset = 0x4, fixed_abs, tag = 'smem constant byte address 0x4 - core index']
  #allocation1 [shape = 'u32[144,128]{1,0:T(1,128)}', space=vmem, size = 0x12000, scoped, tag = 'internal scratch']
  %s0 = inlined_call_operand.hbm [shape: f32[1,2048], index: 0, kind: input, shape index: {}, may-alias: {0,1}]
  %s1 = inlined_call_operand.hbm [shape: f32[1,2048], index: 1, kind: output, shape index: {}, may-alias: {0,1}]
  %s2 = sld [smem:[#allocation0]]
  $region18: #{tpu_custom_call.1} parent=0
    _
  %s4 = ssub.s32 1, %s2
  %s5 = scalar_select 0, %s4, %s2
  $region1: #{tpu_custom_call.1} parent=0
    #allocation2 [shape = 'u8[8192]{0}', space=vmem, size = 0x2000, scoped, tag = 'input window, operand 0, single buffered']
    #allocation3 [shape = 's32[1]{0}', space=sflag, size = 0x4, scoped, tag = 'scoped memory for tpu_custom_call.1']
    #allocation4 [shape = 's32[1]{0}', space=sflag, size = 0x4, scoped, tag = 'scoped memory for tpu_custom_call.1']
    #allocation5 [shape = 'u8[8192]{0}', space=vmem, size = 0x2000, scoped, tag = 'output window, operand 0, single buffered']
    %6 = vsyncpa [#allocation3], 0
    %7 = vsyncpa [#allocation4], 0
    // Predicated region
    $region2: #{tpu_custom_call.1} parent=1 // pred_check
      _
    $region3: #{tpu_custom_call.1} parent=1 // pred_check_branch
      %9 = sbr.rel (0) target = $region5
    $region4: #{tpu_custom_call.1} parent=1 // pred_region
      %s11 = ssub.s32 256, 256
      %12 = vsyncadd [#allocation3], %s11
      %s14 = sshll.u32 [#allocation2], 4
      %s15 = int_to_ptr.vmem [resolvable:$true] %s14
      %17 = dma.hbm_to_vmem [thread:$0]  %s0, 256, %s15, [#allocation3]
    $region5: #{tpu_custom_call.1} parent=1 // pred_fallthru
      _
    // Predicated region
    $region6: #{tpu_custom_call.1} parent=1 // pred_check
      _
    $region7: #{tpu_custom_call.1} parent=1 // pred_check_branch
      %19 = sbr.rel (0) target = $region9
    $region8: #{tpu_custom_call.1} parent=1 // pred_region
      %20 = dma.done [#allocation3], 256
    $region9: #{tpu_custom_call.1} parent=1 // pred_fallthru
      _
    %v21 = vld [vmem:[#allocation2] sm:$0xff]
    %v22 = vld [vmem:[#allocation2 + $0x8] sm:$0xff]
    %23 = vst [vmem:[#allocation5] sm:$0xff] %v21
    %24 = vst [vmem:[#allocation5 + $0x8] sm:$0xff] %v22
    // Predicated region
    $region10: #{tpu_custom_call.1} parent=1 // pred_check
      _
    $region11: #{tpu_custom_call.1} parent=1 // pred_check_branch
      %26 = sbr.rel (0) target = $region13
    $region12: #{tpu_custom_call.1} parent=1 // pred_region
      %s28 = ssub.s32 256, 256
      %29 = vsyncadd [#allocation4], %s28
      %s31 = sshll.u32 [#allocation5], 4
      %s32 = int_to_ptr.vmem [resolvable:$true] %s31
      %34 = dma.vmem_to_hbm [thread:$0]  %s32, 256, %s1, [#allocation4]
    $region13: #{tpu_custom_call.1} parent=1 // pred_fallthru
      _
    // Predicated region
    $region14: #{tpu_custom_call.1} parent=1 // pred_check
      _
    $region15: #{tpu_custom_call.1} parent=1 // pred_check_branch
      %36 = sbr.rel (0) target = $region17
    $region16: #{tpu_custom_call.1} parent=1 // pred_region
      %37 = dma.done [#allocation4], 256
    $region17: #{tpu_custom_call.1} parent=1 // pred_fallthru
      _
    %38 = vsyncpa [#allocation3], 1
    %39 = vsyncpa [#allocation4], 1

</llo_original>
